<compile_context>
chip_gen: v7x
topology: tpu7x:2x2x1
jax: 0.10.0
libtpu: 0.0.40
codegen_flags: <defaults>
</compile_context>

<pallas_src>
import jax
import jax.numpy as jnp
from jax.experimental import pallas as pl
from jax.experimental.pallas import tpu as pltpu


def _round_up(x, m):
    return (x + m - 1) // m * m


def _vmem_limit_bytes():
    """Scoped-VMEM budget per generation: ~3/4 of physical, capped at 96 MiB."""
    try:
        cap = int(pltpu.get_tpu_info().vmem_capacity_bytes)
    except Exception:
        cap = 64 * 1024 * 1024
    return int(min(cap * 3 // 4, 96 * 1024 * 1024))


# ----------------------------------------------------------------------------
# Kernel A: cosine attention + vanilla RNN cell (grid over batch tiles only).
# ----------------------------------------------------------------------------
def attn_rnn_kernel(x_ref, h_ref, enc_ref, w_cat_ref, b_ref,
                    h_f32_ref, h_bf16_ref):
    eps = 1e-8   # norm clamp, same order as torch.CosineSimilarity

    h = h_ref[...]           # (TN, Hp)    f32
    enc = enc_ref[...]       # (TN, T, Hp) f32

    # Cosine similarity without materializing a normalized copy of enc:
    # raw scores via VPU multiply + XLU lane-reduce (M=1 matvecs are MXU-hostile),
    # then scale by the per-row inverse norms.
    q_inv = jax.lax.rsqrt(jnp.sum(h * h, axis=-1, keepdims=True) + eps)   # (TN, 1)
    k_inv = jax.lax.rsqrt(jnp.sum(enc * enc, axis=-1) + eps)              # (TN, T)
    raw = jnp.sum(h[:, None, :] * enc, axis=-1)                           # (TN, T)
    cos = raw * q_inv * k_inv                                             # (TN, T)

    # softmax over T (exact division; runs once per batch tile -> not on the hot path)
    cmax = jnp.max(cos, axis=-1, keepdims=True)
    e = jnp.exp(cos - cmax)
    attn = e / jnp.sum(e, axis=-1, keepdims=True)                         # (TN, T)

    # context vector (becomes the incoming RNN hidden state), again on VPU/XLU
    ctx = jnp.sum(attn[:, :, None] * enc, axis=1)                         # (TN, Hp)

    # Vanilla RNN cell with one fused, pre-transposed weight:
    #   h' = tanh([x, ctx] @ W_cat + (b_ih + b_hh))
    xc = jnp.concatenate([x_ref[...], ctx], axis=-1).astype(jnp.bfloat16)  # (TN, Ep+Hp)
    pre = jnp.dot(xc, w_cat_ref[...], preferred_element_type=jnp.float32) + b_ref[...]
    h_new = jnp.tanh(pre)                                                  # (TN, Hp)

    h_f32_ref[...] = h_new                       # returned hidden state (f32)
    h_bf16_ref[...] = h_new.astype(jnp.bfloat16)  # cast once, fed to the vocab kernel


# ----------------------------------------------------------------------------
# Kernel B: vocab projection + fused log_softmax.
# Grid (batch_tiles, 2, vocab_tiles): sweep p=0 accumulates the online logsumexp,
# sweep p=1 recomputes each tile's logits and writes normalized log-probs directly.
# ----------------------------------------------------------------------------
def vocab_kernel(h_ref, w_ref, b_ref, out_ref, m_sc, l_sc):
    p = pl.program_id(1)
    v = pl.program_id(2)

    @pl.when((p == 0) & (v == 0))
    def _():
        m_sc[...] = jnp.full(m_sc.shape, -jnp.inf, m_sc.dtype)
        l_sc[...] = jnp.zeros(l_sc.shape, l_sc.dtype)

    logits = (jnp.dot(h_ref[...], w_ref[...], preferred_element_type=jnp.float32)
              + b_ref[...])                                                # (TN, TILE_V)

    @pl.when(p == 0)      # sweep 1: online logsumexp over the vocab
    def _():
        m_prev = m_sc[...]
        m_new = jnp.maximum(m_prev, jnp.max(logits, axis=-1, keepdims=True))
        l_sc[...] = (l_sc[...] * jnp.exp(m_prev - m_new)
                     + jnp.sum(jnp.exp(logits - m_new), axis=-1, keepdims=True))
        m_sc[...] = m_new

    @pl.when(p == 1)      # sweep 2: write normalized log-probs (lane-dense in V)
    def _():
        out_ref[...] = logits - (m_sc[...] + jnp.log(l_sc[...]))


def prepare_params(params, max_tile_v=1024):
    """One-time parameter prep (outside the decode loop): transpose weights to MXU-friendly
    layouts, cast to bf16, fuse the RNN weights/biases, pad E/H to 128 and V to the tile."""
    emb, w_ih, w_hh, b_ih, b_hh, w_out, b_out = params
    V, H = w_out.shape
    E = w_ih.shape[1]

    E_pad = _round_up(E, 128)
    H_pad = _round_up(H, 128)
    tile_v = min(max_tile_v, _round_up(V, 128))
    V_pad = _round_up(V, tile_v)

    # lane-dense embedding table
    emb_p = jnp.zeros((emb.shape[0], E_pad), jnp.float32).at[:, :E].set(emb.astype(jnp.float32))

    # fused, pre-transposed RNN weight:  [x, ctx] @ W_cat,  W_cat = [[W_ih^T], [W_hh^T]]
    w_cat = jnp.zeros((E_pad + H_pad, H_pad), jnp.bfloat16)
    w_cat = w_cat.at[:E, :H].set(w_ih.T.astype(jnp.bfloat16))
    w_cat = w_cat.at[E_pad:E_pad + H, :H].set(w_hh.T.astype(jnp.bfloat16))

    bias = jnp.zeros((1, H_pad), jnp.float32).at[:, :H].set(
        (b_ih + b_hh).reshape(1, H).astype(jnp.float32))

    # output projection, pre-transposed + lane-padded; padded vocab columns get a hugely
    # negative bias so they never contribute to the logsumexp.
    w_out_t = jnp.zeros((H_pad, V_pad), jnp.bfloat16).at[:H, :V].set(w_out.T.astype(jnp.bfloat16))
    b_out_p = jnp.full((1, V_pad), -1e30, jnp.float32).at[:, :V].set(
        b_out.reshape(1, V).astype(jnp.float32))
    # TODO(synk): quantize w_out_t to int8 (v5e/v6e) / fp8 (v7x) with per-column scales.

    return dict(emb=emb_p, w_cat=w_cat, bias=bias, w_out=w_out_t, b_out=b_out_p,
                E=E, H=H, V=V, E_pad=E_pad, H_pad=H_pad, V_pad=V_pad, tile_v=tile_v)


def decoder_forward(input_ids, hidden, encoder_outputs, prep):
    """input_ids: (N, 1) int32, hidden: (1, N, H) f32, encoder_outputs: (N, T, H) f32.
    Returns (output (N, V) log-probs, hidden (1, N, H))."""
    N = input_ids.shape[0]
    T = encoder_outputs.shape[1]
    H, V = prep['H'], prep['V']
    H_pad, V_pad, tile_v = prep['H_pad'], prep['V_pad'], prep['tile_v']

    vmem_limit = _vmem_limit_bytes()

    # Batch tiling shared by both kernels. Larger tiles amortize W_out re-streaming in the
    # vocab kernel; shrink only if the double-buffered encoder block of kernel A won't fit.
    tile_n = min(256, _round_up(N, 8))
    while tile_n > 8 and 2 * tile_n * T * H_pad * 4 > vmem_limit // 3:
        tile_n = max(8, ((tile_n // 2) // 8) * 8)
    N_pad = _round_up(N, tile_n)
    pad_n = N_pad - N

    # ------------- glue: embedding lookup + dropout (eval mode -> identity) -------------
    x = prep['emb'][input_ids[:, 0]]                                  # (N, E_pad)
    h2 = hidden[0]                                                    # (N, H)

    x = jnp.pad(x, ((0, pad_n), (0, 0)))
    h2 = jnp.pad(h2.astype(jnp.float32), ((0, pad_n), (0, H_pad - H)))
    enc = jnp.pad(encoder_outputs.astype(jnp.float32),
                  ((0, pad_n), (0, 0), (0, H_pad - H)))

    nb = N_pad // tile_n
    nv = V_pad // tile_v
    E_pad = prep['E_pad']

    # ------------------------- kernel A: attention + RNN cell -------------------------
    h_f32, h_bf16 = pl.pallas_call(
        attn_rnn_kernel,
        out_shape=(jax.ShapeDtypeStruct((N_pad, H_pad), jnp.float32),
                   jax.ShapeDtypeStruct((N_pad, H_pad), jnp.bfloat16)),
        grid_spec=pltpu.PrefetchScalarGridSpec(
            num_scalar_prefetch=0,
            grid=(nb,),
            in_specs=[
                pl.BlockSpec((tile_n, E_pad), lambda b: (b, 0)),           # x
                pl.BlockSpec((tile_n, H_pad), lambda b: (b, 0)),           # previous hidden
                pl.BlockSpec((tile_n, T, H_pad), lambda b: (b, 0, 0)),     # encoder outputs
                pl.BlockSpec((E_pad + H_pad, H_pad), lambda b: (0, 0)),    # fused RNN weight
                pl.BlockSpec((1, H_pad), lambda b: (0, 0)),                # fused bias
            ],
            out_specs=[
                pl.BlockSpec((tile_n, H_pad), lambda b: (b, 0)),           # new hidden (f32)
                pl.BlockSpec((tile_n, H_pad), lambda b: (b, 0)),           # new hidden (bf16)
            ],
        ),
        compiler_params=pltpu.CompilerParams(
            dimension_semantics=("parallel",),
            vmem_limit_bytes=vmem_limit,
        ),
    )(x, h2, enc, prep['w_cat'], prep['bias'])

    # --------------- kernel B: vocab projection + fused log_softmax ---------------
    w_spec = pl.BlockSpec((H_pad, tile_v), lambda b, p, v: (0, v))
    b_spec = pl.BlockSpec((1, tile_v), lambda b, p, v: (0, v))
    if nv >= 3:   # deepen pipelining on the streamed (HBM-bound) operands
        w_spec = pl.BlockSpec((H_pad, tile_v), lambda b, p, v: (0, v),
                              pipeline_mode=pl.Buffered(3))
        b_spec = pl.BlockSpec((1, tile_v), lambda b, p, v: (0, v),
                              pipeline_mode=pl.Buffered(3))

    out = pl.pallas_call(
        vocab_kernel,
        out_shape=jax.ShapeDtypeStruct((N_pad, V_pad), jnp.float32),
        grid_spec=pltpu.PrefetchScalarGridSpec(
            num_scalar_prefetch=0,
            grid=(nb, 2, nv),
            in_specs=[
                pl.BlockSpec((tile_n, H_pad), lambda b, p, v: (b, 0)),     # h_new (bf16, resident)
                w_spec,                                                    # W_out tile (streamed)
                b_spec,                                                    # b_out tile (streamed)
            ],
            # during sweep p=0 the output block index is pinned to (b, 0) so no partial
            # tiles are written back; sweep p=1 writes every tile exactly once.
            out_specs=pl.BlockSpec((tile_n, tile_v), lambda b, p, v: (b, p * v)),
            scratch_shapes=[pltpu.VMEM((tile_n, 1), jnp.float32),   # running max
                            pltpu.VMEM((tile_n, 1), jnp.float32)],  # running sum
        ),
        compiler_params=pltpu.CompilerParams(
            dimension_semantics=("parallel", "arbitrary", "arbitrary"),
            vmem_limit_bytes=vmem_limit,
        ),
    )(h_bf16, prep['w_out'], prep['b_out'])

    output = out[:N, :V]                       # already log-normalized in-kernel
    new_hidden = h_f32[:N, :H][None, :, :]     # (1, N, H)
    return output, new_hidden


def init_params(key, emb_size, encoder_hidden_size, decoder_hidden_size, output_size):
    assert encoder_hidden_size == decoder_hidden_size, "attention path assumes equal hidden sizes"
    ks = jax.random.split(key, 7)
    H, E, V = decoder_hidden_size, emb_size, output_size
    s = lambda fan: 1.0 / jnp.sqrt(jnp.float32(fan))
    emb_table = jax.random.normal(ks[0], (V, E), jnp.float32) * 0.1
    w_ih = jax.random.uniform(ks[1], (H, E), jnp.float32, -s(H), s(H))
    w_hh = jax.random.uniform(ks[2], (H, H), jnp.float32, -s(H), s(H))
    b_ih = jax.random.uniform(ks[3], (1, H), jnp.float32, -s(H), s(H))
    b_hh = jax.random.uniform(ks[4], (1, H), jnp.float32, -s(H), s(H))
    w_out = jax.random.uniform(ks[5], (V, H), jnp.float32, -s(H), s(H))
    b_out = jax.random.uniform(ks[6], (1, V), jnp.float32, -s(H), s(H))
    return emb_table, w_ih, w_hh, b_ih, b_hh, w_out, b_out


if __name__ == "__main__":
    N, T = 2, 8
    emb_size = 32
    encoder_hidden_size = 32
    decoder_hidden_size = 32
    output_size = 48

    key = jax.random.PRNGKey(0)
    k_par, k_in, k_hid, k_enc = jax.random.split(key, 4)

    params = init_params(k_par, emb_size, encoder_hidden_size, decoder_hidden_size, output_size)
    prep = prepare_params(params)

    input_ids = jax.random.randint(k_in, (N, 1), 0, output_size, dtype=jnp.int32)
    hidden = jax.random.normal(k_hid, (1, N, decoder_hidden_size), jnp.float32)
    encoder_outputs = jax.random.normal(k_enc, (N, T, encoder_hidden_size), jnp.float32)

    output, new_hidden = decoder_forward(input_ids, hidden, encoder_outputs, prep)
    jax.block_until_ready((output, new_hidden))

    assert output.shape == (N, output_size)
    assert new_hidden.shape == (1, N, decoder_hidden_size)
    assert bool(jnp.all(jnp.isfinite(output)))
    # log-probs must normalize over the vocabulary
    row_sums = jnp.exp(output).sum(axis=-1)
    assert bool(jnp.allclose(row_sums, 1.0, atol=1e-3)), row_sums
    print("KERNEL_OK")
</pallas_src>

<mosaic_0001>
module attributes {stable_mosaic.version = 11 : i64} {
  func.func @attn_rnn_kernel(%arg0: i32, %arg1: memref<8x128xf32, #tpu.memory_space<vmem>>, %arg2: memref<8x128xf32, #tpu.memory_space<vmem>>, %arg3: memref<8x8x128xf32, #tpu.memory_space<vmem>>, %arg4: memref<256x128xbf16, #tpu.memory_space<vmem>>, %arg5: memref<1x128xf32, #tpu.memory_space<vmem>>, %arg6: memref<8x128xf32, #tpu.memory_space<vmem>>, %arg7: memref<8x128xbf16, #tpu.memory_space<vmem>>) attributes {dimension_semantics = [#tpu.dimension_semantics<parallel>], iteration_bounds = array<i64: 1>, scalar_prefetch = 0 : i64, scratch_operands = 0 : i64, tpu.core_type = #tpu.core_type<tc>, window_params = [{transform_indices = @transform_0, window_bounds = array<i64: 8, 128>}, {transform_indices = @transform_1, window_bounds = array<i64: 8, 128>}, {transform_indices = @transform_2, window_bounds = array<i64: 8, 8, 128>}, {pipeline_mode = #tpu.pipeline_mode<synchronous>, transform_indices = @transform_3, window_bounds = array<i64: 256, 128>}, {pipeline_mode = #tpu.pipeline_mode<synchronous>, transform_indices = @transform_4, window_bounds = array<i64: 1, 128>}, {transform_indices = @transform_5, window_bounds = array<i64: 8, 128>}, {transform_indices = @transform_6, window_bounds = array<i64: 8, 128>}]} {
    %c0 = arith.constant 0 : index
    %c0_0 = arith.constant 0 : index
    %0 = vector.load %arg2[%c0, %c0_0] : memref<8x128xf32, #tpu.memory_space<vmem>>, vector<8x128xf32>
    %c0_1 = arith.constant 0 : index
    %c0_2 = arith.constant 0 : index
    %c0_3 = arith.constant 0 : index
    %1 = vector.load %arg3[%c0_1, %c0_2, %c0_3] : memref<8x8x128xf32, #tpu.memory_space<vmem>>, vector<8x8x128xf32>
    %2 = arith.mulf %0, %0 : vector<8x128xf32>
    %cst = arith.constant dense<0.000000e+00> : vector<8xf32>
    %3 = vector.multi_reduction <add>, %2, %cst [1] : vector<8x128xf32> to vector<8xf32>
    %4 = vector.shape_cast %3 : vector<8xf32> to vector<8x1xf32>
    %cst_4 = arith.constant 9.99999993E-9 : f32
    %5 = vector.broadcast %cst_4 : f32 to vector<8x1xf32>
    %6 = arith.addf %4, %5 : vector<8x1xf32>
    %7 = math.rsqrt %6 : vector<8x1xf32>
    %8 = arith.mulf %1, %1 : vector<8x8x128xf32>
    %cst_5 = arith.constant dense<0.000000e+00> : vector<8x8xf32>
    %9 = vector.multi_reduction <add>, %8, %cst_5 [2] : vector<8x8x128xf32> to vector<8x8xf32>
    %cst_6 = arith.constant 9.99999993E-9 : f32
    %10 = vector.broadcast %cst_6 : f32 to vector<8x8xf32>
    %11 = arith.addf %9, %10 : vector<8x8xf32>
    %12 = math.rsqrt %11 : vector<8x8xf32>
    %13 = vector.shape_cast %0 : vector<8x128xf32> to vector<8x1x128xf32>
    %14 = vector.broadcast %13 : vector<8x1x128xf32> to vector<8x8x128xf32>
    %15 = arith.mulf %14, %1 : vector<8x8x128xf32>
    %cst_7 = arith.constant dense<0.000000e+00> : vector<8x8xf32>
    %16 = vector.multi_reduction <add>, %15, %cst_7 [2] : vector<8x8x128xf32> to vector<8x8xf32>
    %17 = vector.broadcast %7 : vector<8x1xf32> to vector<8x8xf32>
    %18 = arith.mulf %16, %17 : vector<8x8xf32>
    %19 = arith.mulf %18, %12 : vector<8x8xf32>
    %cst_8 = arith.constant dense<0xFF800000> : vector<8xf32>
    %20 = vector.multi_reduction <maximumf>, %19, %cst_8 [1] : vector<8x8xf32> to vector<8xf32>
    %21 = vector.shape_cast %20 : vector<8xf32> to vector<8x1xf32>
    %22 = vector.broadcast %21 : vector<8x1xf32> to vector<8x8xf32>
    %23 = arith.subf %19, %22 : vector<8x8xf32>
    %24 = math.exp %23 : vector<8x8xf32>
    %cst_9 = arith.constant dense<0.000000e+00> : vector<8xf32>
    %25 = vector.multi_reduction <add>, %24, %cst_9 [1] : vector<8x8xf32> to vector<8xf32>
    %26 = vector.shape_cast %25 : vector<8xf32> to vector<8x1xf32>
    %27 = vector.broadcast %26 : vector<8x1xf32> to vector<8x8xf32>
    %28 = arith.divf %24, %27 : vector<8x8xf32>
    %29 = vector.shape_cast %28 : vector<8x8xf32> to vector<8x8x1xf32>
    %30 = vector.broadcast %29 : vector<8x8x1xf32> to vector<8x8x128xf32>
    %31 = arith.mulf %30, %1 : vector<8x8x128xf32>
    %cst_10 = arith.constant dense<0.000000e+00> : vector<8x128xf32>
    %32 = vector.multi_reduction <add>, %31, %cst_10 [1] : vector<8x8x128xf32> to vector<8x128xf32>
    %c0_11 = arith.constant 0 : index
    %c0_12 = arith.constant 0 : index
    %33 = vector.load %arg1[%c0_11, %c0_12] : memref<8x128xf32, #tpu.memory_space<vmem>>, vector<8x128xf32>
    %34 = tpu.concatenate %33, %32 in 1 : vector<8x128xf32>, vector<8x128xf32> -> vector<8x256xf32>
    %35 = arith.truncf %34 : vector<8x256xf32> to vector<8x256xbf16>
    %c0_13 = arith.constant 0 : index
    %c0_14 = arith.constant 0 : index
    %36 = vector.load %arg4[%c0_13, %c0_14] : memref<256x128xbf16, #tpu.memory_space<vmem>>, vector<256x128xbf16>
    %cst_15 = arith.constant dense<0.000000e+00> : vector<8x128xf32>
    %37 = tpu.matmul %35, %36, %cst_15 {dimension_numbers = #tpu.dot_dimension_numbers<[1], [0], [0], [1], [0, 0, 1, 1], [], []>} : vector<8x256xbf16>, vector<256x128xbf16>, vector<8x128xf32> -> vector<8x128xf32>
    %c0_16 = arith.constant 0 : index
    %c0_17 = arith.constant 0 : index
    %38 = vector.load %arg5[%c0_16, %c0_17] : memref<1x128xf32, #tpu.memory_space<vmem>>, vector<1x128xf32>
    %39 = vector.broadcast %38 : vector<1x128xf32> to vector<8x128xf32>
    %40 = arith.addf %37, %39 : vector<8x128xf32>
    %41 = math.tanh %40 : vector<8x128xf32>
    %c0_18 = arith.constant 0 : index
    %c0_19 = arith.constant 0 : index
    %42 = vector.load %arg6[%c0_18, %c0_19] : memref<8x128xf32, #tpu.memory_space<vmem>>, vector<8x128xf32>
    tpu.vector_store %arg6[%c0_18, %c0_19], %41 {strides = array<i32>} : memref<8x128xf32, #tpu.memory_space<vmem>>, vector<8x128xf32>,
    %43 = arith.truncf %41 : vector<8x128xf32> to vector<8x128xbf16>
    %c0_20 = arith.constant 0 : index
    %c0_21 = arith.constant 0 : index
    %44 = vector.load %arg7[%c0_20, %c0_21] : memref<8x128xbf16, #tpu.memory_space<vmem>>, vector<8x128xbf16>
    tpu.vector_store %arg7[%c0_20, %c0_21], %43 {strides = array<i32>} : memref<8x128xbf16, #tpu.memory_space<vmem>>, vector<8x128xbf16>,
    return
  }
  func.func @transform_0(%arg0: i32) -> (i32, i32) {
    %c0_i32 = arith.constant 0 : i32
    %c0_i32_0 = arith.constant 0 : i32
    return %arg0, %c0_i32 : i32, i32
  }
  func.func @transform_1(%arg0: i32) -> (i32, i32) {
    %c0_i32 = arith.constant 0 : i32
    %c0_i32_0 = arith.constant 0 : i32
    return %arg0, %c0_i32 : i32, i32
  }
  func.func @transform_2(%arg0: i32) -> (i32, i32, i32) {
    %c0_i32 = arith.constant 0 : i32
    %c0_i32_0 = arith.constant 0 : i32
    %c0_i32_1 = arith.constant 0 : i32
    return %arg0, %c0_i32, %c0_i32_0 : i32, i32, i32
  }
  func.func @transform_3(%arg0: i32) -> (i32, i32) {
    %c0_i32 = arith.constant 0 : i32
    %c0_i32_0 = arith.constant 0 : i32
    %c0_i32_1 = arith.constant 0 : i32
    return %c0_i32, %c0_i32_0 : i32, i32
  }
  func.func @transform_4(%arg0: i32) -> (i32, i32) {
    %c0_i32 = arith.constant 0 : i32
    %c0_i32_0 = arith.constant 0 : i32
    %c0_i32_1 = arith.constant 0 : i32
    return %c0_i32, %c0_i32_0 : i32, i32
  }
  func.func @transform_5(%arg0: i32) -> (i32, i32) {
    %c0_i32 = arith.constant 0 : i32
    %c0_i32_0 = arith.constant 0 : i32
    return %arg0, %c0_i32 : i32, i32
  }
  func.func @transform_6(%arg0: i32) -> (i32, i32) {
    %c0_i32 = arith.constant 0 : i32
    %c0_i32_0 = arith.constant 0 : i32
    return %arg0, %c0_i32 : i32, i32
  }
}

</mosaic_0001>

<llo_original>
// kernel: tpu_custom_call.1
$region0: #{tpu_custom_call.1}
  #allocation0 [shape = 'u32[]', space=smem, size = 0x4, offset = 0x4, fixed_abs, tag = 'smem constant byte address 0x4 - core index']
  #allocation1 [shape = 'u32[144,128]{1,0:T(1,128)}', space=vmem, size = 0x12000, scoped, tag = 'internal scratch']
  %s0 = inlined_call_operand.hbm [shape: f32[8,128], index: 0, kind: input, shape index: {}]
  %s1 = inlined_call_operand.hbm [shape: f32[8,128], index: 1, kind: input, shape index: {}]
  %s2 = inlined_call_operand.hbm [shape: f32[8,8,128], index: 2, kind: input, shape index: {}]
  %s3 = inlined_call_operand.hbm [shape: bf16[256,128], index: 3, kind: input, shape index: {}]
  %s4 = inlined_call_operand.vmem [shape: f32[1,128], index: 4, kind: input, shape index: {}]
  %s5 = inlined_call_operand.hbm [shape: f32[8,128], index: 5, kind: output, shape index: {0}]
  %s6 = inlined_call_operand.hbm [shape: bf16[8,128], index: 6, kind: output, shape index: {1}]
  %7 = xla_tuple %s5, %s6
  %s8 = sld [smem:[#allocation0]]
  $region54: #{tpu_custom_call.1} parent=0
    _
  %s10 = ssub.s32 1, %s8
  %s11 = scalar_select 0, %s10, %s8
  $region1: #{tpu_custom_call.1} parent=0
    #allocation2 [shape = 'u8[4096]{0}', space=vmem, size = 0x1000, scoped, tag = 'input window, operand 0, single buffered']
    #allocation3 [shape = 's32[1]{0}', space=sflag, size = 0x4, scoped, tag = 'scoped memory for tpu_custom_call.1']
    #allocation4 [shape = 's32[1]{0}', space=sflag, size = 0x4, scoped, tag = 'scoped memory for tpu_custom_call.1']
    #allocation5 [shape = 'u8[4096]{0}', space=vmem, size = 0x1000, scoped, tag = 'input window, operand 1, single buffered']
    #allocation6 [shape = 's32[1]{0}', space=sflag, size = 0x4, scoped, tag = 'scoped memory for tpu_custom_call.1']
    #allocation7 [shape = 'u8[32768]{0}', space=vmem, size = 0x8000, scoped, tag = 'input window, operand 2, single buffered']
    #allocation8 [shape = 'u8[65536]{0}', space=vmem, size = 0x10000, scoped, tag = 'input window, operand 3, single buffered']
    #allocation9 [shape = 's32[1]{0}', space=sflag, size = 0x4, scoped, tag = 'scoped memory for tpu_custom_call.1']
    #allocation10 [shape = 'u8[4096]{0}', space=vmem, size = 0x1000, scoped, tag = 'output window, operand 0, single buffered']
    #allocation11 [shape = 'u8[2048]{0}', space=vmem, size = 0x800, scoped, tag = 'output window, operand 1, single buffered']
    #allocation12 [shape = 's32[1]{0}', space=sflag, size = 0x4, scoped, tag = 'scoped memory for tpu_custom_call.1']
    %12 = vsyncpa [#allocation3], 0
    %13 = vsyncpa [#allocation6], 0
    %14 = vsyncpa [#allocation9], 0
    %15 = vsyncpa [#allocation4], 0
    %16 = vsyncpa [#allocation12], 0
    // Predicated region
    $region2: #{tpu_custom_call.1} parent=1 // pred_check
      _
    $region3: #{tpu_custom_call.1} parent=1 // pred_check_branch
      %18 = sbr.rel (0) target = $region5
    $region4: #{tpu_custom_call.1} parent=1 // pred_region
      %s20 = ssub.s32 128, 128
      %21 = vsyncadd [#allocation3], %s20
      %s23 = sshll.u32 [#allocation2], 4
      %s24 = int_to_ptr.vmem [resolvable:$true] %s23
      %26 = dma.hbm_to_vmem [thread:$0]  %s0, 128, %s24, [#allocation3]
    $region5: #{tpu_custom_call.1} parent=1 // pred_fallthru
      _
    // Predicated region
    $region6: #{tpu_custom_call.1} parent=1 // pred_check
      _
    $region7: #{tpu_custom_call.1} parent=1 // pred_check_branch
      %28 = sbr.rel (0) target = $region9
    $region8: #{tpu_custom_call.1} parent=1 // pred_region
      %s30 = ssub.s32 128, 128
      %31 = vsyncadd [#allocation6], %s30
      %s33 = sshll.u32 [#allocation5], 4
      %s34 = int_to_ptr.vmem [resolvable:$true] %s33
      %36 = dma.hbm_to_vmem [thread:$0]  %s1, 128, %s34, [#allocation6]
    $region9: #{tpu_custom_call.1} parent=1 // pred_fallthru
      _
    // Predicated region
    $region10: #{tpu_custom_call.1} parent=1 // pred_check
      _
    $region11: #{tpu_custom_call.1} parent=1 // pred_check_branch
      %38 = sbr.rel (0) target = $region13
    $region12: #{tpu_custom_call.1} parent=1 // pred_region
      %s40 = ssub.s32 1024, 1024
      %41 = vsyncadd [#allocation6], %s40
      %s42 = sshll.u32 [#allocation7], 4
      %s43 = int_to_ptr.vmem [resolvable:$true] %s42
      %48 = dma.hbm_to_vmem [thread:$0]  %s2, 1024, %s43, [#allocation6], 128, 128, 8
    $region13: #{tpu_custom_call.1} parent=1 // pred_fallthru
      _
    // Predicated region
    $region14: #{tpu_custom_call.1} parent=1 // pred_check
      _
    $region15: #{tpu_custom_call.1} parent=1 // pred_check_branch
      %50 = sbr.rel (0) target = $region17
    $region16: #{tpu_custom_call.1} parent=1 // pred_region
      %s52 = ssub.s32 2048, 2048
      %53 = vsyncadd [#allocation9], %s52
      %s54 = sshll.u32 [#allocation8], 4
      %s55 = int_to_ptr.vmem [resolvable:$true] %s54
      %60 = dma.hbm_to_vmem [thread:$0]  %s3, 2048, %s55, [#allocation9], 64, 64, 4
    $region17: #{tpu_custom_call.1} parent=1 // pred_fallthru
      _
    // Predicated region
    $region18: #{tpu_custom_call.1} parent=1 // pred_check
      _
    $region19: #{tpu_custom_call.1} parent=1 // pred_check_branch
      %62 = sbr.rel (0) target = $region21
    $region20: #{tpu_custom_call.1} parent=1 // pred_region
      _
    $region21: #{tpu_custom_call.1} parent=1 // pred_fallthru
      _
    // Predicated region
    $region22: #{tpu_custom_call.1} parent=1 // pred_check
      _
    $region23: #{tpu_custom_call.1} parent=1 // pred_check_branch
      %64 = sbr.rel (0) target = $region25
    $region24: #{tpu_custom_call.1} parent=1 // pred_region
      %65 = dma.done [#allocation3], 128
    $region25: #{tpu_custom_call.1} parent=1 // pred_fallthru
      _
    // Predicated region
    $region26: #{tpu_custom_call.1} parent=1 // pred_check
      _
    $region27: #{tpu_custom_call.1} parent=1 // pred_check_branch
      %67 = sbr.rel (0) target = $region29
    $region28: #{tpu_custom_call.1} parent=1 // pred_region
      %68 = dma.done [#allocation6], 128
    $region29: #{tpu_custom_call.1} parent=1 // pred_fallthru
      _
    // Predicated region
    $region30: #{tpu_custom_call.1} parent=1 // pred_check
      _
    $region31: #{tpu_custom_call.1} parent=1 // pred_check_branch
      %70 = sbr.rel (0) target = $region33
    $region32: #{tpu_custom_call.1} parent=1 // pred_region
      %71 = dma.done [#allocation6], 1024
    $region33: #{tpu_custom_call.1} parent=1 // pred_fallthru
      _
    // Predicated region
    $region34: #{tpu_custom_call.1} parent=1 // pred_check
      _
    $region35: #{tpu_custom_call.1} parent=1 // pred_check_branch
      %73 = sbr.rel (0) target = $region37
    $region36: #{tpu_custom_call.1} parent=1 // pred_region
      %74 = dma.done [#allocation9], 2048
    $region37: #{tpu_custom_call.1} parent=1 // pred_fallthru
      _
    %v76 = vld [vmem:[#allocation5] sm:$0xff]
    %v77 = vld [vmem:[#allocation7] sm:$0xff]
    %v78 = vld [vmem:[#allocation7 + $0x8] sm:$0xff]
    %v79 = vld [vmem:[#allocation7 + $0x10] sm:$0xff]
    %v80 = vld [vmem:[#allocation7 + $0x18] sm:$0xff]
    %v81 = vld [vmem:[#allocation7 + $0x20] sm:$0xff]
    %v82 = vld [vmem:[#allocation7 + $0x28] sm:$0xff]
    %v83 = vld [vmem:[#allocation7 + $0x30] sm:$0xff]
    %v84 = vld [vmem:[#allocation7 + $0x38] sm:$0xff]
    %v85 = vmul.f32 %v76, %v76
    %86 = vadd.xlane.f32.xlu0 %v85
    %v87 = vpop.xlane.xlu0 %86
    %v88 = vadd.f32 %v87, 1e-08
    %v89 = vrsqrt.pop %v88
    %v90 = vmul.f32 %v77, %v77
    %v91 = vmul.f32 %v78, %v78
    %v92 = vmul.f32 %v79, %v79
    %v93 = vmul.f32 %v80, %v80
    %v94 = vmul.f32 %v81, %v81
    %v95 = vmul.f32 %v82, %v82
    %v96 = vmul.f32 %v83, %v83
    %v97 = vmul.f32 %v84, %v84
    %98 = vadd.xlane.f32.xlu0 %v90
    %v99 = vpop.xlane.xlu0 %98
    %100 = vadd.xlane.f32.xlu0 %v91
    %v101 = vpop.xlane.xlu0 %100
    %102 = vadd.xlane.f32.xlu0 %v92
    %v103 = vpop.xlane.xlu0 %102
    %104 = vadd.xlane.f32.xlu0 %v93
    %v105 = vpop.xlane.xlu0 %104
    %106 = vadd.xlane.f32.xlu0 %v94
    %v107 = vpop.xlane.xlu0 %106
    %108 = vadd.xlane.f32.xlu0 %v95
    %v109 = vpop.xlane.xlu0 %108
    %110 = vadd.xlane.f32.xlu0 %v96
    %v111 = vpop.xlane.xlu0 %110
    %112 = vadd.xlane.f32.xlu0 %v97
    %v113 = vpop.xlane.xlu0 %112
    %v114 = vadd.f32 %v99, 1e-08
    %v115 = vadd.f32 %v101, 1e-08
    %v116 = vadd.f32 %v103, 1e-08
    %v117 = vadd.f32 %v105, 1e-08
    %v118 = vadd.f32 %v107, 1e-08
    %v119 = vadd.f32 %v109, 1e-08
    %v120 = vadd.f32 %v111, 1e-08
    %v121 = vadd.f32 %v113, 1e-08
    %v122 = vrsqrt.pop %v114
    %v123 = vrsqrt.pop %v115
    %v124 = vrsqrt.pop %v116
    %v125 = vrsqrt.pop %v117
    %v126 = vrsqrt.pop %v118
    %v127 = vrsqrt.pop %v119
    %v128 = vrsqrt.pop %v120
    %v129 = vrsqrt.pop %v121
    %v131 = vcombine.high %v76, %v76
    %v133 = vunpack.c.l.s4 1966171168
    %v134 = vunpack.c.0.s8 %v133
    %v135 = vlaneseq
    %v136 = vshrl.u32 %v135, 7
    %v137 = vsub.s32 %v134, %v136
    %v138 = vrot.slane %v76, %v137
    %v140 = vunpack.c.l.s4 1966171168
    %v141 = vunpack.c.0.s8 %v140
    %v142 = vlaneseq
    %v143 = vshrl.u32 %v142, 7
    %v144 = vsub.s32 %v141, %v143
    %v145 = vrot.slane %v131, %v144
    %v146 = vcombine.high %v138, %v138
    %v147 = vcombine.high %v145, %v145
    %v149 = vunpack.c.l.s4 1966171168
    %v150 = vunpack.c.0.s8 %v149
    %v151 = vlaneseq
    %v152 = vshrl.u32 %v151, 7
    %v153 = vsub.s32 %v150, %v152
    %v154 = vrot.slane %v138, %v153
    %v156 = vunpack.c.l.s4 1966171168
    %v157 = vunpack.c.0.s8 %v156
    %v158 = vlaneseq
    %v159 = vshrl.u32 %v158, 7
    %v160 = vsub.s32 %v157, %v159
    %v161 = vrot.slane %v145, %v160
    %v163 = vunpack.c.l.s4 1966171168
    %v164 = vunpack.c.0.s8 %v163
    %v165 = vlaneseq
    %v166 = vshrl.u32 %v165, 7
    %v167 = vsub.s32 %v164, %v166
    %v168 = vrot.slane %v146, %v167
    %v170 = vunpack.c.l.s4 1966171168
    %v171 = vunpack.c.0.s8 %v170
    %v172 = vlaneseq
    %v173 = vshrl.u32 %v172, 7
    %v174 = vsub.s32 %v171, %v173
    %v175 = vrot.slane %v147, %v174
    %v176 = vcombine.high %v154, %v154
    %v177 = vcombine.high %v161, %v161
    %v178 = vcombine.high %v168, %v168
    %v179 = vcombine.high %v175, %v175
    %v180 = vlaneseq
    %v181 = vshrl.u32 %v180, 7
    %v182 = vsub.s32 0, %v181
    %v183 = vrot.slane %v154, %v182
    %v184 = vlaneseq
    %v185 = vshrl.u32 %v184, 7
    %v186 = vsub.s32 0, %v185
    %v187 = vrot.slane %v168, %v186
    %v188 = vlaneseq
    %v189 = vshrl.u32 %v188, 7
    %v190 = vsub.s32 0, %v189
    %v191 = vrot.slane %v176, %v190
    %v192 = vlaneseq
    %v193 = vshrl.u32 %v192, 7
    %v194 = vsub.s32 0, %v193
    %v195 = vrot.slane %v178, %v194
    %v196 = vlaneseq
    %v197 = vshrl.u32 %v196, 7
    %v198 = vsub.s32 0, %v197
    %v199 = vrot.slane %v161, %v198
    %v200 = vlaneseq
    %v201 = vshrl.u32 %v200, 7
    %v202 = vsub.s32 0, %v201
    %v203 = vrot.slane %v175, %v202
    %v204 = vlaneseq
    %v205 = vshrl.u32 %v204, 7
    %v206 = vsub.s32 0, %v205
    %v207 = vrot.slane %v177, %v206
    %v208 = vlaneseq
    %v209 = vshrl.u32 %v208, 7
    %v210 = vsub.s32 0, %v209
    %v211 = vrot.slane %v179, %v210
    %v220 = vmul.f32 %v183, %v77
    %v221 = vmul.f32 %v187, %v78
    %v222 = vmul.f32 %v191, %v79
    %v223 = vmul.f32 %v195, %v80
    %v224 = vmul.f32 %v199, %v81
    %v225 = vmul.f32 %v203, %v82
    %v226 = vmul.f32 %v207, %v83
    %v227 = vmul.f32 %v211, %v84
    %228 = vadd.xlane.f32.xlu0 %v220
    %v229 = vpop.xlane.xlu0 %228
    %230 = vadd.xlane.f32.xlu0 %v221
    %v231 = vpop.xlane.xlu0 %230
    %232 = vadd.xlane.f32.xlu0 %v222
    %v233 = vpop.xlane.xlu0 %232
    %234 = vadd.xlane.f32.xlu0 %v223
    %v235 = vpop.xlane.xlu0 %234
    %236 = vadd.xlane.f32.xlu0 %v224
    %v237 = vpop.xlane.xlu0 %236
    %238 = vadd.xlane.f32.xlu0 %v225
    %v239 = vpop.xlane.xlu0 %238
    %240 = vadd.xlane.f32.xlu0 %v226
    %v241 = vpop.xlane.xlu0 %240
    %242 = vadd.xlane.f32.xlu0 %v227
    %v243 = vpop.xlane.xlu0 %242
    %v245 = vlaneseq
    %v246 = vshrl.u32 %v245, 7
    %v247 = vsub.s32 0, %v246
    %v248 = vrot.slane %v89, %v247
    %v249 = vlaneseq
    %v250 = vshrl.u32 %v249, 7
    %v251 = vsub.s32 1, %v250
    %v252 = vrot.slane %v89, %v251
    %v253 = vlaneseq
    %v254 = vshrl.u32 %v253, 7
    %v255 = vsub.s32 2, %v254
    %v256 = vrot.slane %v89, %v255
    %v257 = vlaneseq
    %v258 = vshrl.u32 %v257, 7
    %v259 = vsub.s32 3, %v258
    %v260 = vrot.slane %v89, %v259
    %v261 = vlaneseq
    %v262 = vshrl.u32 %v261, 7
    %v263 = vsub.s32 4, %v262
    %v264 = vrot.slane %v89, %v263
    %v265 = vlaneseq
    %v266 = vshrl.u32 %v265, 7
    %v267 = vsub.s32 5, %v266
    %v268 = vrot.slane %v89, %v267
    %v269 = vlaneseq
    %v270 = vshrl.u32 %v269, 7
    %v271 = vsub.s32 6, %v270
    %v272 = vrot.slane %v89, %v271
    %v273 = vlaneseq
    %v274 = vshrl.u32 %v273, 7
    %v275 = vsub.s32 7, %v274
    %v276 = vrot.slane %v89, %v275
    %v285 = vmul.f32 %v229, %v248
    %v286 = vmul.f32 %v231, %v252
    %v287 = vmul.f32 %v233, %v256
    %v288 = vmul.f32 %v235, %v260
    %v289 = vmul.f32 %v237, %v264
    %v290 = vmul.f32 %v239, %v268
    %v291 = vmul.f32 %v241, %v272
    %v292 = vmul.f32 %v243, %v276
    %v293 = vmul.f32 %v285, %v122
    %v294 = vmul.f32 %v286, %v123
    %v295 = vmul.f32 %v287, %v124
    %v296 = vmul.f32 %v288, %v125
    %v297 = vmul.f32 %v289, %v126
    %v298 = vmul.f32 %v290, %v127
    %v299 = vmul.f32 %v291, %v128
    %v300 = vmul.f32 %v292, %v129
    %309 = vset.pattern.permute.xlu0 0
    %310 = vperm.xlu0 %309, %v293
    %v311 = vpop.permute.xlu0 %310
    %312 = vset.pattern.permute.xlu0 0
    %313 = vperm.xlu0 %312, %v294
    %v314 = vpop.permute.xlu0 %313
    %315 = vset.pattern.permute.xlu0 0
    %316 = vperm.xlu0 %315, %v295
    %v317 = vpop.permute.xlu0 %316
    %318 = vset.pattern.permute.xlu0 0
    %319 = vperm.xlu0 %318, %v296
    %v320 = vpop.permute.xlu0 %319
    %321 = vset.pattern.permute.xlu0 0
    %322 = vperm.xlu0 %321, %v297
    %v323 = vpop.permute.xlu0 %322
    %324 = vset.pattern.permute.xlu0 0
    %325 = vperm.xlu0 %324, %v298
    %v326 = vpop.permute.xlu0 %325
    %327 = vset.pattern.permute.xlu0 0
    %328 = vperm.xlu0 %327, %v299
    %v329 = vpop.permute.xlu0 %328
    %330 = vset.pattern.permute.xlu0 0
    %331 = vperm.xlu0 %330, %v300
    %v332 = vpop.permute.xlu0 %331
    %v333 = vlaneseq
    %v334 = vand.u32 %v333, 127
    %v335 = vlaneseq
    %v336 = vshrl.u32 %v335, 7
    %v337 = vsub.s32 %v334, %v336
    %v338 = vrot.slane %v311, %v337
    %v339 = vlaneseq
    %v340 = vshrl.u32 %v339, 7
    %v341 = vsub.s32 %v334, %v340
    %v342 = vrot.slane %v314, %v341
    %v343 = vlaneseq
    %v344 = vshrl.u32 %v343, 7
    %v345 = vsub.s32 %v334, %v344
    %v346 = vrot.slane %v317, %v345
    %v347 = vlaneseq
    %v348 = vshrl.u32 %v347, 7
    %v349 = vsub.s32 %v334, %v348
    %v350 = vrot.slane %v320, %v349
    %v351 = vlaneseq
    %v352 = vshrl.u32 %v351, 7
    %v353 = vsub.s32 %v334, %v352
    %v354 = vrot.slane %v323, %v353
    %v355 = vlaneseq
    %v356 = vshrl.u32 %v355, 7
    %v357 = vsub.s32 %v334, %v356
    %v358 = vrot.slane %v326, %v357
    %v359 = vlaneseq
    %v360 = vshrl.u32 %v359, 7
    %v361 = vsub.s32 %v334, %v360
    %v362 = vrot.slane %v329, %v361
    %v363 = vlaneseq
    %v364 = vshrl.u32 %v363, 7
    %v365 = vsub.s32 %v334, %v364
    %v366 = vrot.slane %v332, %v365
    %vm367 = vcmask 1041409
    %v368 = vsel %vm367, %v342, %v338
    %vm369 = vcmask 1042434
    %v370 = vsel %vm369, %v346, %v368
    %vm371 = vcmask 1043459
    %v372 = vsel %vm371, %v350, %v370
    %vm373 = vcmask 1044484
    %v374 = vsel %vm373, %v354, %v372
    %vm375 = vcmask 1045509
    %v376 = vsel %vm375, %v358, %v374
    %vm377 = vcmask 1046534
    %v378 = vsel %vm377, %v362, %v376
    %vm379 = vcmask 1047559
    %v380 = vsel %vm379, %v366, %v378
    %vm382 = vcmask 64512
    %v383 = vsel %vm382, %v380, -inf
    %384 = vmax.xlane.f32.xlu0 %v383
    %v385 = vpop.xlane.xlu0 %384
    %v387 = vlaneseq
    %v388 = vshrl.u32 %v387, 7
    %v389 = vsub.s32 0, %v388
    %v390 = vrot.slane %v385, %v389
    %v391 = vlaneseq
    %v392 = vshrl.u32 %v391, 7
    %v393 = vsub.s32 1, %v392
    %v394 = vrot.slane %v385, %v393
    %v395 = vlaneseq
    %v396 = vshrl.u32 %v395, 7
    %v397 = vsub.s32 2, %v396
    %v398 = vrot.slane %v385, %v397
    %v399 = vlaneseq
    %v400 = vshrl.u32 %v399, 7
    %v401 = vsub.s32 3, %v400
    %v402 = vrot.slane %v385, %v401
    %v403 = vlaneseq
    %v404 = vshrl.u32 %v403, 7
    %v405 = vsub.s32 4, %v404
    %v406 = vrot.slane %v385, %v405
    %v407 = vlaneseq
    %v408 = vshrl.u32 %v407, 7
    %v409 = vsub.s32 5, %v408
    %v410 = vrot.slane %v385, %v409
    %v411 = vlaneseq
    %v412 = vshrl.u32 %v411, 7
    %v413 = vsub.s32 6, %v412
    %v414 = vrot.slane %v385, %v413
    %v415 = vlaneseq
    %v416 = vshrl.u32 %v415, 7
    %v417 = vsub.s32 7, %v416
    %v418 = vrot.slane %v385, %v417
    %v427 = vsub.f32 %v293, %v390
    %v428 = vsub.f32 %v294, %v394
    %v429 = vsub.f32 %v295, %v398
    %v430 = vsub.f32 %v296, %v402
    %v431 = vsub.f32 %v297, %v406
    %v432 = vsub.f32 %v298, %v410
    %v433 = vsub.f32 %v299, %v414
    %v434 = vsub.f32 %v300, %v418
    %v435 = vmul.f32 %v427, 1.442695
    %v436 = vpow.pop %v435
    %v437 = vmul.f32 %v428, 1.442695
    %v438 = vpow.pop %v437
    %v439 = vmul.f32 %v429, 1.442695
    %v440 = vpow.pop %v439
    %v441 = vmul.f32 %v430, 1.442695
    %v442 = vpow.pop %v441
    %v443 = vmul.f32 %v431, 1.442695
    %v444 = vpow.pop %v443
    %v445 = vmul.f32 %v432, 1.442695
    %v446 = vpow.pop %v445
    %v447 = vmul.f32 %v433, 1.442695
    %v448 = vpow.pop %v447
    %v449 = vmul.f32 %v434, 1.442695
    %v450 = vpow.pop %v449
    %459 = vset.pattern.permute.xlu0 0
    %460 = vperm.xlu0 %459, %v436
    %v461 = vpop.permute.xlu0 %460
    %462 = vset.pattern.permute.xlu0 0
    %463 = vperm.xlu0 %462, %v438
    %v464 = vpop.permute.xlu0 %463
    %465 = vset.pattern.permute.xlu0 0
    %466 = vperm.xlu0 %465, %v440
    %v467 = vpop.permute.xlu0 %466
    %468 = vset.pattern.permute.xlu0 0
    %469 = vperm.xlu0 %468, %v442
    %v470 = vpop.permute.xlu0 %469
    %471 = vset.pattern.permute.xlu0 0
    %472 = vperm.xlu0 %471, %v444
    %v473 = vpop.permute.xlu0 %472
    %474 = vset.pattern.permute.xlu0 0
    %475 = vperm.xlu0 %474, %v446
    %v476 = vpop.permute.xlu0 %475
    %477 = vset.pattern.permute.xlu0 0
    %478 = vperm.xlu0 %477, %v448
    %v479 = vpop.permute.xlu0 %478
    %480 = vset.pattern.permute.xlu0 0
    %481 = vperm.xlu0 %480, %v450
    %v482 = vpop.permute.xlu0 %481
    %v483 = vlaneseq
    %v484 = vshrl.u32 %v483, 7
    %v485 = vsub.s32 %v334, %v484
    %v486 = vrot.slane %v461, %v485
    %v487 = vlaneseq
    %v488 = vshrl.u32 %v487, 7
    %v489 = vsub.s32 %v334, %v488
    %v490 = vrot.slane %v464, %v489
    %v491 = vlaneseq
    %v492 = vshrl.u32 %v491, 7
    %v493 = vsub.s32 %v334, %v492
    %v494 = vrot.slane %v467, %v493
    %v495 = vlaneseq
    %v496 = vshrl.u32 %v495, 7
    %v497 = vsub.s32 %v334, %v496
    %v498 = vrot.slane %v470, %v497
    %v499 = vlaneseq
    %v500 = vshrl.u32 %v499, 7
    %v501 = vsub.s32 %v334, %v500
    %v502 = vrot.slane %v473, %v501
    %v503 = vlaneseq
    %v504 = vshrl.u32 %v503, 7
    %v505 = vsub.s32 %v334, %v504
    %v506 = vrot.slane %v476, %v505
    %v507 = vlaneseq
    %v508 = vshrl.u32 %v507, 7
    %v509 = vsub.s32 %v334, %v508
    %v510 = vrot.slane %v479, %v509
    %v511 = vlaneseq
    %v512 = vshrl.u32 %v511, 7
    %v513 = vsub.s32 %v334, %v512
    %v514 = vrot.slane %v482, %v513
    %v515 = vsel %vm367, %v490, %v486
    %v516 = vsel %vm369, %v494, %v515
    %v517 = vsel %vm371, %v498, %v516
    %v518 = vsel %vm373, %v502, %v517
    %v519 = vsel %vm375, %v506, %v518
    %v520 = vsel %vm377, %v510, %v519
    %v521 = vsel %vm379, %v514, %v520
    %v523 = vsel %vm382, %v521, 0.0
    %524 = vadd.xlane.f32.xlu0 %v523
    %v525 = vpop.xlane.xlu0 %524
    %v527 = vlaneseq
    %v528 = vshrl.u32 %v527, 7
    %v529 = vsub.s32 0, %v528
    %v530 = vrot.slane %v525, %v529
    %v531 = vlaneseq
    %v532 = vshrl.u32 %v531, 7
    %v533 = vsub.s32 1, %v532
    %v534 = vrot.slane %v525, %v533
    %v535 = vlaneseq
    %v536 = vshrl.u32 %v535, 7
    %v537 = vsub.s32 2, %v536
    %v538 = vrot.slane %v525, %v537
    %v539 = vlaneseq
    %v540 = vshrl.u32 %v539, 7
    %v541 = vsub.s32 3, %v540
    %v542 = vrot.slane %v525, %v541
    %v543 = vlaneseq
    %v544 = vshrl.u32 %v543, 7
    %v545 = vsub.s32 4, %v544
    %v546 = vrot.slane %v525, %v545
    %v547 = vlaneseq
    %v548 = vshrl.u32 %v547, 7
    %v549 = vsub.s32 5, %v548
    %v550 = vrot.slane %v525, %v549
    %v551 = vlaneseq
    %v552 = vshrl.u32 %v551, 7
    %v553 = vsub.s32 6, %v552
    %v554 = vrot.slane %v525, %v553
    %v555 = vlaneseq
    %v556 = vshrl.u32 %v555, 7
    %v557 = vsub.s32 7, %v556
    %v558 = vrot.slane %v525, %v557
    %v567 = vrcp.pop %v530
    %v568 = vmul.f32 %v436, %v567
    %v569 = vrcp.pop %v534
    %v570 = vmul.f32 %v438, %v569
    %v571 = vrcp.pop %v538
    %v572 = vmul.f32 %v440, %v571
    %v573 = vrcp.pop %v542
    %v574 = vmul.f32 %v442, %v573
    %v575 = vrcp.pop %v546
    %v576 = vmul.f32 %v444, %v575
    %v577 = vrcp.pop %v550
    %v578 = vmul.f32 %v446, %v577
    %v579 = vrcp.pop %v554
    %v580 = vmul.f32 %v448, %v579
    %v581 = vrcp.pop %v558
    %v582 = vmul.f32 %v450, %v581
    %584 = vset.pattern.permute.xlu0 0
    %585 = vperm.xlu0 %584, %v568
    %v586 = vpop.permute.xlu0 %585
    %589 = vset.pattern.permute.xlu0 0
    %590 = vperm.xlu0 %589, %v570
    %v591 = vpop.permute.xlu0 %590
    %594 = vset.pattern.permute.xlu0 0
    %595 = vperm.xlu0 %594, %v572
    %v596 = vpop.permute.xlu0 %595
    %599 = vset.pattern.permute.xlu0 0
    %600 = vperm.xlu0 %599, %v574
    %v601 = vpop.permute.xlu0 %600
    %604 = vset.pattern.permute.xlu0 0
    %605 = vperm.xlu0 %604, %v576
    %v606 = vpop.permute.xlu0 %605
    %609 = vset.pattern.permute.xlu0 0
    %610 = vperm.xlu0 %609, %v578
    %v611 = vpop.permute.xlu0 %610
    %614 = vset.pattern.permute.xlu0 0
    %615 = vperm.xlu0 %614, %v580
    %v616 = vpop.permute.xlu0 %615
    %619 = vset.pattern.permute.xlu0 0
    %620 = vperm.xlu0 %619, %v582
    %v621 = vpop.permute.xlu0 %620
    %v623 = vmul.f32 %v586, %v77
    %v624 = vmul.f32 %v591, %v78
    %v625 = vmul.f32 %v596, %v79
    %v626 = vmul.f32 %v601, %v80
    %v627 = vmul.f32 %v606, %v81
    %v628 = vmul.f32 %v611, %v82
    %v629 = vmul.f32 %v616, %v83
    %v630 = vmul.f32 %v621, %v84
    %v631 = vrot.slane %v623, 4
    %v632 = vadd.f32 %v623, %v631
    %v633 = vrot.slane %v632, 2
    %v634 = vadd.f32 %v632, %v633
    %v635 = vrot.slane %v634, 1
    %v636 = vadd.f32 %v634, %v635
    %v637 = vrot.slane %v624, 4
    %v638 = vadd.f32 %v624, %v637
    %v639 = vrot.slane %v638, 2
    %v640 = vadd.f32 %v638, %v639
    %v641 = vrot.slane %v640, 1
    %v642 = vadd.f32 %v640, %v641
    %v643 = vrot.slane %v625, 4
    %v644 = vadd.f32 %v625, %v643
    %v645 = vrot.slane %v644, 2
    %v646 = vadd.f32 %v644, %v645
    %v647 = vrot.slane %v646, 1
    %v648 = vadd.f32 %v646, %v647
    %v649 = vrot.slane %v626, 4
    %v650 = vadd.f32 %v626, %v649
    %v651 = vrot.slane %v650, 2
    %v652 = vadd.f32 %v650, %v651
    %v653 = vrot.slane %v652, 1
    %v654 = vadd.f32 %v652, %v653
    %v655 = vrot.slane %v627, 4
    %v656 = vadd.f32 %v627, %v655
    %v657 = vrot.slane %v656, 2
    %v658 = vadd.f32 %v656, %v657
    %v659 = vrot.slane %v658, 1
    %v660 = vadd.f32 %v658, %v659
    %v661 = vrot.slane %v628, 4
    %v662 = vadd.f32 %v628, %v661
    %v663 = vrot.slane %v662, 2
    %v664 = vadd.f32 %v662, %v663
    %v665 = vrot.slane %v664, 1
    %v666 = vadd.f32 %v664, %v665
    %v667 = vrot.slane %v629, 4
    %v668 = vadd.f32 %v629, %v667
    %v669 = vrot.slane %v668, 2
    %v670 = vadd.f32 %v668, %v669
    %v671 = vrot.slane %v670, 1
    %v672 = vadd.f32 %v670, %v671
    %v673 = vrot.slane %v630, 4
    %v674 = vadd.f32 %v630, %v673
    %v675 = vrot.slane %v674, 2
    %v676 = vadd.f32 %v674, %v675
    %v677 = vrot.slane %v676, 1
    %v678 = vadd.f32 %v676, %v677
    %v679 = vld [vmem:[#allocation2] sm:$0xff]
    %v688 = vsel %vm367, %v642, %v636
    %v689 = vsel %vm369, %v648, %v688
    %v690 = vsel %vm371, %v654, %v689
    %v691 = vsel %vm373, %v660, %v690
    %v692 = vsel %vm375, %v666, %v691
    %v693 = vsel %vm377, %v672, %v692
    %v694 = vsel %vm379, %v678, %v693
    %v696 = vpack.c.bf16 %v679, %v679
    %v697 = vpack.c.bf16 %v694, %v694
    %v698 = vld [vmem:[#allocation8] sm:$0xf]
    %v699 = vld [vmem:[#allocation8 + $0x4] sm:$0xf]
    %v700 = vld [vmem:[#allocation8 + $0x8] sm:$0xf]
    %v701 = vld [vmem:[#allocation8 + $0xc] sm:$0xf]
    %v702 = vld [vmem:[#allocation8 + $0x10] sm:$0xf]
    %v703 = vld [vmem:[#allocation8 + $0x14] sm:$0xf]
    %v704 = vld [vmem:[#allocation8 + $0x18] sm:$0xf]
    %v705 = vld [vmem:[#allocation8 + $0x1c] sm:$0xf]
    %v706 = vld [vmem:[#allocation8 + $0x20] sm:$0xf]
    %v707 = vld [vmem:[#allocation8 + $0x24] sm:$0xf]
    %v708 = vld [vmem:[#allocation8 + $0x28] sm:$0xf]
    %v709 = vld [vmem:[#allocation8 + $0x2c] sm:$0xf]
    %v710 = vld [vmem:[#allocation8 + $0x30] sm:$0xf]
    %v711 = vld [vmem:[#allocation8 + $0x34] sm:$0xf]
    %v712 = vld [vmem:[#allocation8 + $0x38] sm:$0xf]
    %v713 = vld [vmem:[#allocation8 + $0x3c] sm:$0xf]
    %v714 = vld [vmem:[#allocation8 + $0x40] sm:$0xf]
    %v715 = vld [vmem:[#allocation8 + $0x44] sm:$0xf]
    %v716 = vld [vmem:[#allocation8 + $0x48] sm:$0xf]
    %v717 = vld [vmem:[#allocation8 + $0x4c] sm:$0xf]
    %v718 = vld [vmem:[#allocation8 + $0x50] sm:$0xf]
    %v719 = vld [vmem:[#allocation8 + $0x54] sm:$0xf]
    %v720 = vld [vmem:[#allocation8 + $0x58] sm:$0xf]
    %v721 = vld [vmem:[#allocation8 + $0x5c] sm:$0xf]
    %v722 = vld [vmem:[#allocation8 + $0x60] sm:$0xf]
    %v723 = vld [vmem:[#allocation8 + $0x64] sm:$0xf]
    %v724 = vld [vmem:[#allocation8 + $0x68] sm:$0xf]
    %v725 = vld [vmem:[#allocation8 + $0x6c] sm:$0xf]
    %v726 = vld [vmem:[#allocation8 + $0x70] sm:$0xf]
    %v727 = vld [vmem:[#allocation8 + $0x74] sm:$0xf]
    %v728 = vld [vmem:[#allocation8 + $0x78] sm:$0xf]
    %v729 = vld [vmem:[#allocation8 + $0x7c] sm:$0xf]
    %v730 = vld [vmem:[%s4] sm:$0x1]
    %v732 = vlaneseq
    %v733 = vshrl.u32 %v732, 7
    %v734 = vsub.s32 0, %v733
    %v735 = vrot.slane %v730, %v734
    %v769 = vunpack.c.l.b16 %v698
    %v770 = vunpack.c.l.b16 %v699
    %v771 = vunpack.c.l.b16 %v700
    %v772 = vunpack.c.l.b16 %v701
    %v773 = vunpack.c.l.b16 %v702
    %v774 = vunpack.c.l.b16 %v703
    %v775 = vunpack.c.l.b16 %v704
    %v776 = vunpack.c.l.b16 %v705
    %v777 = vunpack.c.l.b16 %v706
    %v778 = vunpack.c.l.b16 %v707
    %v779 = vunpack.c.l.b16 %v708
    %v780 = vunpack.c.l.b16 %v709
    %v781 = vunpack.c.l.b16 %v710
    %v782 = vunpack.c.l.b16 %v711
    %v783 = vunpack.c.l.b16 %v712
    %v784 = vunpack.c.l.b16 %v713
    %v785 = vunpack.c.l.b16 %v714
    %v786 = vunpack.c.l.b16 %v715
    %v787 = vunpack.c.l.b16 %v716
    %v788 = vunpack.c.l.b16 %v717
    %v789 = vunpack.c.l.b16 %v718
    %v790 = vunpack.c.l.b16 %v719
    %v791 = vunpack.c.l.b16 %v720
    %v792 = vunpack.c.l.b16 %v721
    %v793 = vunpack.c.l.b16 %v722
    %v794 = vunpack.c.l.b16 %v723
    %v795 = vunpack.c.l.b16 %v724
    %v796 = vunpack.c.l.b16 %v725
    %v797 = vunpack.c.l.b16 %v726
    %v798 = vunpack.c.l.b16 %v727
    %v799 = vunpack.c.l.b16 %v728
    %v800 = vunpack.c.l.b16 %v729
    %v801 = vpack.c.b16 %v770, %v769
    %v802 = vpack.c.b16 %v772, %v771
    %v803 = vpack.c.b16 %v774, %v773
    %v804 = vpack.c.b16 %v776, %v775
    %v805 = vpack.c.b16 %v778, %v777
    %v806 = vpack.c.b16 %v780, %v779
    %v807 = vpack.c.b16 %v782, %v781
    %v808 = vpack.c.b16 %v784, %v783
    %v809 = vpack.c.b16 %v786, %v785
    %v810 = vpack.c.b16 %v788, %v787
    %v811 = vpack.c.b16 %v790, %v789
    %v812 = vpack.c.b16 %v792, %v791
    %v813 = vpack.c.b16 %v794, %v793
    %v814 = vpack.c.b16 %v796, %v795
    %v815 = vpack.c.b16 %v798, %v797
    %v816 = vpack.c.b16 %v800, %v799
    %833 = vmatprep.subr.bf16.mxu0 0
    %834 = vmatpush1.bf16.msra.mxu0 %v801
    %835 = vmatprep.subr.bf16.mxu0 0
    %836 = vmatpush1.bf16.msra.mxu0 %v802
    %837 = vmatprep.subr.bf16.mxu0 0
    %838 = vmatpush1.bf16.msra.mxu0 %v803
    %839 = vmatprep.subr.bf16.mxu0 0
    %840 = vmatpush1.bf16.msra.mxu0 %v804
    %841 = vmatprep.subr.bf16.mxu0 0
    %842 = vmatpush1.bf16.msra.mxu0 %v805
    %843 = vmatprep.subr.bf16.mxu0 0
    %844 = vmatpush1.bf16.msra.mxu0 %v806
    %845 = vmatprep.subr.bf16.mxu0 0
    %846 = vmatpush1.bf16.msra.mxu0 %v807
    %847 = vmatprep.subr.bf16.mxu0 0
    %848 = vmatpush1.bf16.msra.mxu0 %v808
    %849 = vmatprep.subr.bf16.mxu0 0
    %850 = vmatpush1.bf16.msra.mxu0 %v809
    %851 = vmatprep.subr.bf16.mxu0 0
    %852 = vmatpush1.bf16.msra.mxu0 %v810
    %853 = vmatprep.subr.bf16.mxu0 0
    %854 = vmatpush1.bf16.msra.mxu0 %v811
    %855 = vmatprep.subr.bf16.mxu0 0
    %856 = vmatpush1.bf16.msra.mxu0 %v812
    %857 = vmatprep.subr.bf16.mxu0 0
    %858 = vmatpush1.bf16.msra.mxu0 %v813
    %859 = vmatprep.subr.bf16.mxu0 0
    %860 = vmatpush1.bf16.msra.mxu0 %v814
    %861 = vmatprep.subr.bf16.mxu0 0
    %862 = vmatpush1.bf16.msra.mxu0 %v815
    %863 = vmatprep.subr.bf16.mxu0 0
    %864 = vmatpush1.bf16.msra.mxu0 %v816
    %865 = vmatprep.mubr.bf16.mxu0 %v697
    %866 = vmatmul.mubr.bf16.gmra.mrb[0].mxu0 %v696
    %v867 = vpop.f32.mrb[0].mxu0
    %v868 = vadd.f32 %v735, %v867
    %v869 = vpop.f32.mrb[0].mxu0
    %v870 = vpop.f32.mrb[0].mxu0
    %v871 = vpop.f32.mrb[0].mxu0
    %872 = vdwg.mxu0
    %v873 = vtanh.pop %v868
    %874 = vst [vmem:[#allocation10] sm:$0xff] %v873
    %v875 = vpack.c.bf16 %v873, %v873
    %876 = vst [vmem:[#allocation11] sm:$0xf] %v875
    // Predicated region
    $region38: #{tpu_custom_call.1} parent=1 // pred_check
      _
    $region39: #{tpu_custom_call.1} parent=1 // pred_check_branch
      %878 = sbr.rel (0) target = $region41
    $region40: #{tpu_custom_call.1} parent=1 // pred_region
      %s880 = ssub.s32 128, 128
      %881 = vsyncadd [#allocation4], %s880
      %s883 = sshll.u32 [#allocation10], 4
      %s884 = int_to_ptr.vmem [resolvable:$true] %s883
      %886 = dma.vmem_to_hbm [thread:$0]  %s884, 128, %s5, [#allocation4]
    $region41: #{tpu_custom_call.1} parent=1 // pred_fallthru
      _
    // Predicated region
    $region42: #{tpu_custom_call.1} parent=1 // pred_check
      _
    $region43: #{tpu_custom_call.1} parent=1 // pred_check_branch
      %888 = sbr.rel (0) target = $region45
    $region44: #{tpu_custom_call.1} parent=1 // pred_region
      %s890 = ssub.s32 64, 64
      %891 = vsyncadd [#allocation12], %s890
      %s893 = sshll.u32 [#allocation11], 4
      %s894 = int_to_ptr.vmem [resolvable:$true] %s893
      %896 = dma.vmem_to_hbm [thread:$0]  %s894, 64, %s6, [#allocation12]
    $region45: #{tpu_custom_call.1} parent=1 // pred_fallthru
      _
    // Predicated region
    $region46: #{tpu_custom_call.1} parent=1 // pred_check
      _
    $region47: #{tpu_custom_call.1} parent=1 // pred_check_branch
      %898 = sbr.rel (0) target = $region49
    $region48: #{tpu_custom_call.1} parent=1 // pred_region
      %899 = dma.done [#allocation4], 128
    $region49: #{tpu_custom_call.1} parent=1 // pred_fallthru
      _
    // Predicated region
    $region50: #{tpu_custom_call.1} parent=1 // pred_check
      _
    $region51: #{tpu_custom_call.1} parent=1 // pred_check_branch
      %901 = sbr.rel (0) target = $region53
    $region52: #{tpu_custom_call.1} parent=1 // pred_region
      %902 = dma.done [#allocation12], 64
    $region53: #{tpu_custom_call.1} parent=1 // pred_fallthru
      _
    %903 = vsyncpa [#allocation3], 1
    %904 = vsyncpa [#allocation6], 1
    %905 = vsyncpa [#allocation9], 1
    %906 = vsyncpa [#allocation4], 1
    %907 = vsyncpa [#allocation12], 1

</llo_original>
